<compile_context>
chip_gen: v6e
topology: v6e:2x2x1
jax: 0.10.0
libtpu: 0.0.40
codegen_flags: <defaults>
</compile_context>

<pallas_src>
import jax
import jax.numpy as jnp
from jax.experimental import pallas as pl
from jax.experimental.pallas import tpu as pltpu


def _bilinear_attn_kernel(q_ref, k_ref, v_ref, mask_ref, o_ref):
    # q_ref: (bb, bq, D) bf16, k_ref/v_ref: (bb, Lk, D) bf16, mask_ref: (bb, bq, Lk) int8
    # scores = q @ k^T  (contract D; MXU handles the transposed rhs natively)
    s = jnp.einsum("bqd,bkd->bqk", q_ref[...], k_ref[...],
                   preferred_element_type=jnp.float32)
    s = jnp.where(mask_ref[...] != 0, jnp.float32(-1e9), s)
    # numerically-stable softmax along the last dim, all in f32 (matches F.softmax(dim=-1))
    s = s - jnp.max(s, axis=-1, keepdims=True)
    p = jnp.exp(s)
    p = p * pl.reciprocal(jnp.sum(p, axis=-1, keepdims=True), approx=True)
    # TODO(synk): att_dropout is identity in eval mode; training-mode dropout not implemented.
    ctx = jnp.einsum("bqk,bkd->bqd", p.astype(v_ref.dtype), v_ref[...],
                     preferred_element_type=jnp.float32)
    o_ref[...] = ctx.astype(o_ref.dtype)


_VMEM_BUDGET_BYTES = 24 * 1024 * 1024  # under the 32 MiB default scoped VMEM on all gens


def _largest_divisor_leq(n, cap):
    cap = max(1, min(n, cap))
    for t in range(cap, 0, -1):
        if n % t == 0:
            return t
    return 1


def _step_vmem_bytes(bb, bq, Lk, D):
    # double-buffered pipeline tiles + in-kernel f32 scores/probs temporaries
    in_bytes = bb * (bq * D * 2 + 2 * Lk * D * 2 + bq * Lk * 1)  # q(bf16), k+v(bf16), mask(i8)
    out_bytes = bb * bq * D * 4                                   # f32 output tile
    scratch = 2 * bb * bq * Lk * 4                                # scores + probs (f32)
    return 2 * (in_bytes + out_bytes) + scratch


def _pick_blocks(B, Lq, Lk, D):
    # Query tile: biggest divisor of Lq <= 512 that fits the VMEM budget.
    bq = _largest_divisor_leq(Lq, 512)
    while bq > 8 and _step_vmem_bytes(1, bq, Lk, D) > _VMEM_BUDGET_BYTES:
        bq = _largest_divisor_leq(Lq, bq // 2)
    if bq != Lq and bq % 8 != 0:
        bq = Lq  # full dims are always a legal block shape
    # Pack batch elements so the MXU sees a reasonably tall LHS per step.
    bb = 1
    for cand in range(B, 0, -1):
        if B % cand == 0 and cand * bq <= 1024 and \
           _step_vmem_bytes(cand, bq, Lk, D) <= _VMEM_BUDGET_BYTES:
            bb = cand
            break
    return bb, bq


def bilinear_attention(q, k, v, mask):
    """q:(B,Lq,D)  k:(B,Lk,D)  v:(B,Lk,D)  mask:(B,Lq,Lk) bool/int -> (B,Lq,D) f32.

    mask nonzero/True means "masked out" (filled with -1e9 before softmax),
    matching torch's masked_fill_.
    """
    B, Lq, D = q.shape
    _, Lk, _ = k.shape

    # bf16 matmul operands, int8 mask; softmax math stays f32 in-kernel.
    q = q.astype(jnp.bfloat16)
    k = k.astype(jnp.bfloat16)
    v = v.astype(jnp.bfloat16)
    mask = mask.astype(jnp.int8)

    bb, bq = _pick_blocks(B, Lq, Lk, D)
    grid = (B // bb, Lq // bq)

    grid_spec = pltpu.PrefetchScalarGridSpec(
        num_scalar_prefetch=0,
        grid=grid,
        in_specs=[
            pl.BlockSpec((bb, bq, D), lambda b, i: (b, i, 0)),   # q tile
            pl.BlockSpec((bb, Lk, D), lambda b, i: (b, 0, 0)),   # k (whole Lk per batch block)
            pl.BlockSpec((bb, Lk, D), lambda b, i: (b, 0, 0)),   # v
            pl.BlockSpec((bb, bq, Lk), lambda b, i: (b, i, 0)),  # mask tile (int8)
        ],
        out_specs=pl.BlockSpec((bb, bq, D), lambda b, i: (b, i, 0)),
    )

    return pl.pallas_call(
        _bilinear_attn_kernel,
        out_shape=jax.ShapeDtypeStruct((B, Lq, D), jnp.float32),
        grid_spec=grid_spec,
        compiler_params=pltpu.CompilerParams(
            # both grid axes are fully independent -> shard across TCs on v7x
            dimension_semantics=("parallel", "parallel")),
    )(q, k, v, mask)


def proj_k(k_raw, weight):
    """F.linear(k, weight): (B, Lk, D) -> (B, Lk, D).  No transpose: the kernel
    contracts over D directly, so the extra HBM read+write of the old
    .transpose(1, 2) is eliminated.  Plain-JAX glue (a single GEMM)."""
    return jnp.einsum("bld,ed->ble", k_raw, weight)


def _reference(q, k, v, mask):
    s = jnp.einsum("bqd,bkd->bqk", q, k)
    s = jnp.where(mask, -1e9, s)
    p = jax.nn.softmax(s, axis=-1)
    return jnp.einsum("bqk,bkd->bqd", p, v)


if __name__ == "__main__":
    B, Lq, Lk, D = 2, 8, 8, 32
    key = jax.random.PRNGKey(0)
    kq, kk, kv, km, kw = jax.random.split(key, 5)

    # deterministic "parameter" init mirroring nn.init.uniform_(weight, -0.01, 0.01)
    weight = jax.random.uniform(kw, (D, D), jnp.float32, minval=-0.01, maxval=0.01)

    q = jax.random.normal(kq, (B, Lq, D), jnp.float32)
    k_raw = jax.random.normal(kk, (B, Lk, D), jnp.float32)
    v = jax.random.normal(kv, (B, Lk, D), jnp.float32)
    mask = jax.random.uniform(km, (B, Lq, Lk)) < 0.25  # True == masked

    k = proj_k(k_raw, weight)  # (B, Lk, D) -- un-transposed layout the kernel wants

    out = bilinear_attention(q, k, v, mask)
    out = jax.block_until_ready(out)

    # reference on the same bf16-rounded operands (kernel matmuls: bf16 in, f32 acc)
    qb = q.astype(jnp.bfloat16).astype(jnp.float32)
    kb = k.astype(jnp.bfloat16).astype(jnp.float32)
    vb = v.astype(jnp.bfloat16).astype(jnp.float32)
    ref = _reference(qb, kb, vb, mask)

    assert out.shape == (B, Lq, D)
    assert out.dtype == jnp.float32
    err = float(jnp.max(jnp.abs(out - ref)))
    assert jnp.allclose(out, ref, atol=1e-2, rtol=1e-2), f"max abs err {err}"
    print("KERNEL_OK")
</pallas_src>

<mosaic_0001>
module attributes {stable_mosaic.version = 11 : i64} {
  func.func @_bilinear_attn_kernel(%arg0: i32, %arg1: i32, %arg2: memref<2x8x32xbf16, #tpu.memory_space<vmem>>, %arg3: memref<2x8x32xbf16, #tpu.memory_space<vmem>>, %arg4: memref<2x8x32xbf16, #tpu.memory_space<vmem>>, %arg5: memref<2x8x8xi8, #tpu.memory_space<vmem>>, %arg6: memref<2x8x32xf32, #tpu.memory_space<vmem>>) attributes {dimension_semantics = [#tpu.dimension_semantics<parallel>, #tpu.dimension_semantics<parallel>], iteration_bounds = array<i64: 1, 1>, scalar_prefetch = 0 : i64, scratch_operands = 0 : i64, tpu.core_type = #tpu.core_type<tc>, window_params = [{transform_indices = @transform_0, window_bounds = array<i64: 2, 8, 32>}, {transform_indices = @transform_1, window_bounds = array<i64: 2, 8, 32>}, {transform_indices = @transform_2, window_bounds = array<i64: 2, 8, 32>}, {transform_indices = @transform_3, window_bounds = array<i64: 2, 8, 8>}, {transform_indices = @transform_4, window_bounds = array<i64: 2, 8, 32>}]} {
    %c0 = arith.constant 0 : index
    %c0_0 = arith.constant 0 : index
    %c0_1 = arith.constant 0 : index
    %0 = vector.load %arg2[%c0, %c0_0, %c0_1] : memref<2x8x32xbf16, #tpu.memory_space<vmem>>, vector<2x8x32xbf16>
    %c0_2 = arith.constant 0 : index
    %c0_3 = arith.constant 0 : index
    %c0_4 = arith.constant 0 : index
    %1 = vector.load %arg3[%c0_2, %c0_3, %c0_4] : memref<2x8x32xbf16, #tpu.memory_space<vmem>>, vector<2x8x32xbf16>
    "tpu.trace_start"() <{level = 10 : i32, message = "bqd,bkd->bqk"}> : () -> ()
    %cst = arith.constant dense<0.000000e+00> : vector<2x8x8xf32>
    %2 = tpu.matmul %0, %1, %cst {dimension_numbers = #tpu.dot_dimension_numbers<[2], [2], [1], [1], [0, 0, 0, 1, 1, 1], [0], [0]>} : vector<2x8x32xbf16>, vector<2x8x32xbf16>, vector<2x8x8xf32> -> vector<2x8x8xf32>
    "tpu.trace_stop"() : () -> ()
    %c0_5 = arith.constant 0 : index
    %c0_6 = arith.constant 0 : index
    %c0_7 = arith.constant 0 : index
    %3 = vector.load %arg5[%c0_5, %c0_6, %c0_7] : memref<2x8x8xi8, #tpu.memory_space<vmem>>, vector<2x8x8xi8>
    %c0_i8 = arith.constant 0 : i8
    %4 = vector.broadcast %c0_i8 : i8 to vector<2x8x8xi8>
    %5 = arith.cmpi ne, %3, %4 : vector<2x8x8xi8>
    %cst_8 = arith.constant -1.000000e+09 : f32
    %6 = vector.broadcast %cst_8 : f32 to vector<2x8x8xf32>
    %7 = arith.select %5, %6, %2 : vector<2x8x8xi1>, vector<2x8x8xf32>
    %cst_9 = arith.constant dense<0xFF800000> : vector<2x8xf32>
    %8 = vector.multi_reduction <maximumf>, %7, %cst_9 [2] : vector<2x8x8xf32> to vector<2x8xf32>
    %9 = vector.shape_cast %8 : vector<2x8xf32> to vector<2x8x1xf32>
    %10 = vector.broadcast %9 : vector<2x8x1xf32> to vector<2x8x8xf32>
    %11 = arith.subf %7, %10 : vector<2x8x8xf32>
    %12 = math.exp %11 : vector<2x8x8xf32>
    %cst_10 = arith.constant dense<0.000000e+00> : vector<2x8xf32>
    %13 = vector.multi_reduction <add>, %12, %cst_10 [2] : vector<2x8x8xf32> to vector<2x8xf32>
    %14 = vector.shape_cast %13 : vector<2x8xf32> to vector<2x8x1xf32>
    %15 = tpu.reciprocal %14 {approx = true} : vector<2x8x1xf32> -> vector<2x8x1xf32>
    %16 = vector.broadcast %15 : vector<2x8x1xf32> to vector<2x8x8xf32>
    %17 = arith.mulf %12, %16 : vector<2x8x8xf32>
    %18 = arith.truncf %17 : vector<2x8x8xf32> to vector<2x8x8xbf16>
    %c0_11 = arith.constant 0 : index
    %c0_12 = arith.constant 0 : index
    %c0_13 = arith.constant 0 : index
    %19 = vector.load %arg4[%c0_11, %c0_12, %c0_13] : memref<2x8x32xbf16, #tpu.memory_space<vmem>>, vector<2x8x32xbf16>
    "tpu.trace_start"() <{level = 10 : i32, message = "bqk,bkd->bqd"}> : () -> ()
    %cst_14 = arith.constant dense<0.000000e+00> : vector<2x8x32xf32>
    %20 = tpu.matmul %18, %19, %cst_14 {dimension_numbers = #tpu.dot_dimension_numbers<[2], [1], [1], [2], [0, 0, 0, 1, 1, 2], [0], [0]>} : vector<2x8x8xbf16>, vector<2x8x32xbf16>, vector<2x8x32xf32> -> vector<2x8x32xf32>
    "tpu.trace_stop"() : () -> ()
    %c0_15 = arith.constant 0 : index
    %c0_16 = arith.constant 0 : index
    %c0_17 = arith.constant 0 : index
    %21 = vector.load %arg6[%c0_15, %c0_16, %c0_17] : memref<2x8x32xf32, #tpu.memory_space<vmem>>, vector<2x8x32xf32>
    tpu.vector_store %arg6[%c0_15, %c0_16, %c0_17], %20 {strides = array<i32>} : memref<2x8x32xf32, #tpu.memory_space<vmem>>, vector<2x8x32xf32>,
    return
  }
  func.func @transform_0(%arg0: i32, %arg1: i32) -> (i32, i32, i32) {
    %c0_i32 = arith.constant 0 : i32
    %c0_i32_0 = arith.constant 0 : i32
    return %arg0, %arg1, %c0_i32 : i32, i32, i32
  }
  func.func @transform_1(%arg0: i32, %arg1: i32) -> (i32, i32, i32) {
    %c0_i32 = arith.constant 0 : i32
    %c0_i32_0 = arith.constant 0 : i32
    %c0_i32_1 = arith.constant 0 : i32
    return %arg0, %c0_i32, %c0_i32_0 : i32, i32, i32
  }
  func.func @transform_2(%arg0: i32, %arg1: i32) -> (i32, i32, i32) {
    %c0_i32 = arith.constant 0 : i32
    %c0_i32_0 = arith.constant 0 : i32
    %c0_i32_1 = arith.constant 0 : i32
    return %arg0, %c0_i32, %c0_i32_0 : i32, i32, i32
  }
  func.func @transform_3(%arg0: i32, %arg1: i32) -> (i32, i32, i32) {
    %c0_i32 = arith.constant 0 : i32
    %c0_i32_0 = arith.constant 0 : i32
    return %arg0, %arg1, %c0_i32 : i32, i32, i32
  }
  func.func @transform_4(%arg0: i32, %arg1: i32) -> (i32, i32, i32) {
    %c0_i32 = arith.constant 0 : i32
    %c0_i32_0 = arith.constant 0 : i32
    return %arg0, %arg1, %c0_i32 : i32, i32, i32
  }
}

</mosaic_0001>

<llo_original>
// kernel: tpu_custom_call.1
$region0: #{tpu_custom_call.1}
  #allocation0 [shape = 'u32[]', space=smem, size = 0x4, offset = 0x4, fixed_abs, tag = 'smem constant byte address 0x4 - core index']
  #allocation1 [shape = 'u32[144,128]{1,0:T(1,128)}', space=vmem, size = 0x12000, scoped, tag = 'internal scratch']
  %s0 = inlined_call_operand.hbm [shape: bf16[2,8,32], index: 0, kind: input, shape index: {}]
  %s1 = inlined_call_operand.hbm [shape: bf16[2,8,32], index: 1, kind: input, shape index: {}]
  %s2 = inlined_call_operand.hbm [shape: bf16[2,8,32], index: 2, kind: input, shape index: {}]
  %s3 = inlined_call_operand.vmem [shape: s8[2,8,8], index: 3, kind: input, shape index: {}]
  %s4 = inlined_call_operand.hbm [shape: f32[2,8,32], index: 4, kind: output, shape index: {}]
  %s5 = sld [smem:[#allocation0]]
  $region38: #{tpu_custom_call.1} parent=0
    _
  %s7 = ssub.s32 1, %s5
  %s8 = scalar_select 0, %s7, %s5
  $region1: #{tpu_custom_call.1} parent=0
    #allocation2 [shape = 'u8[4096]{0}', space=vmem, size = 0x1000, scoped, tag = 'input window, operand 0, single buffered']
    #allocation3 [shape = 's32[1]{0}', space=sflag, size = 0x4, scoped, tag = 'scoped memory for tpu_custom_call.1']
    #allocation4 [shape = 's32[1]{0}', space=sflag, size = 0x4, scoped, tag = 'scoped memory for tpu_custom_call.1']
    #allocation5 [shape = 'u8[4096]{0}', space=vmem, size = 0x1000, scoped, tag = 'input window, operand 1, single buffered']
    #allocation6 [shape = 's32[1]{0}', space=sflag, size = 0x4, scoped, tag = 'scoped memory for tpu_custom_call.1']
    #allocation7 [shape = 'u8[4096]{0}', space=vmem, size = 0x1000, scoped, tag = 'input window, operand 2, single buffered']
    #allocation8 [shape = 'u8[8192]{0}', space=vmem, size = 0x2000, scoped, tag = 'output window, operand 0, single buffered']
    %9 = vsyncpa [#allocation3], 0
    %10 = vsyncpa [#allocation6], 0
    %11 = vsyncpa [#allocation4], 0
    // Predicated region
    $region2: #{tpu_custom_call.1} parent=1 // pred_check
      _
    $region3: #{tpu_custom_call.1} parent=1 // pred_check_branch
      %13 = sbr.rel (0) target = $region5
    $region4: #{tpu_custom_call.1} parent=1 // pred_region
      %s15 = ssub.s32 128, 128
      %16 = vsyncadd [#allocation3], %s15
      %s17 = sshll.u32 [#allocation2], 4
      %s18 = int_to_ptr.vmem [resolvable:$true] %s17
      %23 = dma.hbm_to_vmem [thread:$0]  %s0, 128, %s18, [#allocation3], 64, 64, 4
    $region5: #{tpu_custom_call.1} parent=1 // pred_fallthru
      _
    // Predicated region
    $region6: #{tpu_custom_call.1} parent=1 // pred_check
      _
    $region7: #{tpu_custom_call.1} parent=1 // pred_check_branch
      %25 = sbr.rel (0) target = $region9
    $region8: #{tpu_custom_call.1} parent=1 // pred_region
      %s27 = ssub.s32 128, 128
      %28 = vsyncadd [#allocation6], %s27
      %s29 = sshll.u32 [#allocation5], 4
      %s30 = int_to_ptr.vmem [resolvable:$true] %s29
      %35 = dma.hbm_to_vmem [thread:$0]  %s1, 128, %s30, [#allocation6], 64, 64, 4
    $region9: #{tpu_custom_call.1} parent=1 // pred_fallthru
      _
    // Predicated region
    $region10: #{tpu_custom_call.1} parent=1 // pred_check
      _
    $region11: #{tpu_custom_call.1} parent=1 // pred_check_branch
      %37 = sbr.rel (0) target = $region13
    $region12: #{tpu_custom_call.1} parent=1 // pred_region
      %s39 = ssub.s32 128, 128
      %40 = vsyncadd [#allocation6], %s39
      %s41 = sshll.u32 [#allocation7], 4
      %s42 = int_to_ptr.vmem [resolvable:$true] %s41
      %47 = dma.hbm_to_vmem [thread:$0]  %s2, 128, %s42, [#allocation6], 64, 64, 4
    $region13: #{tpu_custom_call.1} parent=1 // pred_fallthru
      _
    // Predicated region
    $region14: #{tpu_custom_call.1} parent=1 // pred_check
      _
    $region15: #{tpu_custom_call.1} parent=1 // pred_check_branch
      %49 = sbr.rel (0) target = $region17
    $region16: #{tpu_custom_call.1} parent=1 // pred_region
      _
    $region17: #{tpu_custom_call.1} parent=1 // pred_fallthru
      _
    // Predicated region
    $region18: #{tpu_custom_call.1} parent=1 // pred_check
      _
    $region19: #{tpu_custom_call.1} parent=1 // pred_check_branch
      %51 = sbr.rel (0) target = $region21
    $region20: #{tpu_custom_call.1} parent=1 // pred_region
      %52 = dma.done [#allocation3], 128
    $region21: #{tpu_custom_call.1} parent=1 // pred_fallthru
      _
    // Predicated region
    $region22: #{tpu_custom_call.1} parent=1 // pred_check
      _
    $region23: #{tpu_custom_call.1} parent=1 // pred_check_branch
      %54 = sbr.rel (0) target = $region25
    $region24: #{tpu_custom_call.1} parent=1 // pred_region
      %55 = dma.done [#allocation6], 128
    $region25: #{tpu_custom_call.1} parent=1 // pred_fallthru
      _
    // Predicated region
    $region26: #{tpu_custom_call.1} parent=1 // pred_check
      _
    $region27: #{tpu_custom_call.1} parent=1 // pred_check_branch
      %57 = sbr.rel (0) target = $region29
    $region28: #{tpu_custom_call.1} parent=1 // pred_region
      %58 = dma.done [#allocation6], 128
    $region29: #{tpu_custom_call.1} parent=1 // pred_fallthru
      _
    %v62 = vld [vmem:[#allocation2] sm:$0xf]
    %v63 = vld [vmem:[#allocation2 + $0x4] sm:$0xf]
    %v64 = vld [vmem:[#allocation5] sm:$0xf]
    %v65 = vld [vmem:[#allocation5 + $0x4] sm:$0xf]
    %vm66 = vcmask 261120
    %v68 = vsel %vm66, %v62, 0
    %v71 = vsel %vm66, %v64, 0
    %73 = vmatprep.subr.bf16.mxu0 0
    %74 = vmatpush1.bf16.xpose.msra.mxu0 0
    %75 = vmatprep.subr.bf16.mxu0 0
    %76 = vmatpush1.bf16.xpose.msra.mxu0 0
    %77 = vmatprep.subr.bf16.mxu0 0
    %78 = vmatpush1.bf16.xpose.msra.mxu0 0
    %79 = vmatprep.subr.bf16.mxu0 0
    %80 = vmatpush1.bf16.xpose.msra.mxu0 0
    %81 = vmatprep.subr.bf16.mxu0 0
    %82 = vmatpush1.bf16.xpose.msra.mxu0 0
    %83 = vmatprep.subr.bf16.mxu0 0
    %84 = vmatpush1.bf16.xpose.msra.mxu0 0
    %85 = vmatprep.subr.bf16.mxu0 0
    %86 = vmatpush1.bf16.xpose.msra.mxu0 0
    %87 = vmatprep.subr.bf16.mxu0 0
    %88 = vmatpush1.bf16.xpose.msra.mxu0 %v71
    %89 = vmatprep.subr.bf16.mxu0 0
    %90 = vmatpush2.bf16.xpose.msra.mxu0 0
    %91 = vmatprep.subr.bf16.mxu0 0
    %92 = vmatpush2.bf16.xpose.msra.mxu0 0
    %93 = vmatprep.subr.bf16.mxu0 0
    %94 = vmatpush2.bf16.xpose.msra.mxu0 0
    %95 = vmatprep.subr.bf16.mxu0 0
    %96 = vmatpush2.bf16.xpose.msra.mxu0 0
    %97 = vmatprep.subr.bf16.mxu0 0
    %98 = vmatpush2.bf16.xpose.msra.mxu0 0
    %99 = vmatprep.subr.bf16.mxu0 0
    %100 = vmatpush2.bf16.xpose.msra.mxu0 0
    %101 = vmatprep.subr.bf16.mxu0 0
    %102 = vmatpush2.bf16.xpose.msra.mxu0 0
    %103 = vmatprep.subr.bf16.mxu0 0
    %104 = vmatpush2.bf16.xpose.msra.mxu0 0
    %105 = vmatprep.mubr.bf16.mxu0 0
    %106 = vmatmul.mubr.bf16.gmra.mxu0 %v68
    %v107 = vpop.f32.mrf.mxu0
    %v108 = vadd.f32 0.0, %v107
    %v109 = vpop.f32.mrf.mxu0
    %v110 = vpop.f32.mrf.mxu0
    %v111 = vpop.f32.mrf.mxu0
    %112 = vdwg.mxu0
    %v114 = vsel %vm66, %v63, 0
    %v117 = vsel %vm66, %v65, 0
    %119 = vmatprep.subr.bf16.mxu0 0
    %120 = vmatpush1.bf16.xpose.msra.mxu0 0
    %121 = vmatprep.subr.bf16.mxu0 0
    %122 = vmatpush1.bf16.xpose.msra.mxu0 0
    %123 = vmatprep.subr.bf16.mxu0 0
    %124 = vmatpush1.bf16.xpose.msra.mxu0 0
    %125 = vmatprep.subr.bf16.mxu0 0
    %126 = vmatpush1.bf16.xpose.msra.mxu0 0
    %127 = vmatprep.subr.bf16.mxu0 0
    %128 = vmatpush1.bf16.xpose.msra.mxu0 0
    %129 = vmatprep.subr.bf16.mxu0 0
    %130 = vmatpush1.bf16.xpose.msra.mxu0 0
    %131 = vmatprep.subr.bf16.mxu0 0
    %132 = vmatpush1.bf16.xpose.msra.mxu0 0
    %133 = vmatprep.subr.bf16.mxu0 0
    %134 = vmatpush1.bf16.xpose.msra.mxu0 %v117
    %135 = vmatprep.subr.bf16.mxu0 0
    %136 = vmatpush2.bf16.xpose.msra.mxu0 0
    %137 = vmatprep.subr.bf16.mxu0 0
    %138 = vmatpush2.bf16.xpose.msra.mxu0 0
    %139 = vmatprep.subr.bf16.mxu0 0
    %140 = vmatpush2.bf16.xpose.msra.mxu0 0
    %141 = vmatprep.subr.bf16.mxu0 0
    %142 = vmatpush2.bf16.xpose.msra.mxu0 0
    %143 = vmatprep.subr.bf16.mxu0 0
    %144 = vmatpush2.bf16.xpose.msra.mxu0 0
    %145 = vmatprep.subr.bf16.mxu0 0
    %146 = vmatpush2.bf16.xpose.msra.mxu0 0
    %147 = vmatprep.subr.bf16.mxu0 0
    %148 = vmatpush2.bf16.xpose.msra.mxu0 0
    %149 = vmatprep.subr.bf16.mxu0 0
    %150 = vmatpush2.bf16.xpose.msra.mxu0 0
    %151 = vmatprep.mubr.bf16.mxu0 0
    %152 = vmatmul.mubr.bf16.gmra.mxu0 %v114
    %v153 = vpop.f32.mrf.mxu0
    %v154 = vadd.f32 0.0, %v153
    %v155 = vpop.f32.mrf.mxu0
    %v156 = vpop.f32.mrf.mxu0
    %v157 = vpop.f32.mrf.mxu0
    %158 = vdwg.mxu0
    %v159 = vld [vmem:[%s3] sm:$0x3]
    %v160 = vld [vmem:[%s3 + $0x2] sm:$0x3]
    %vm161 = vnez %v159
    %vm162 = vnez %v160
    %v163 = vsel %vm161, 16843009, 0
    %v164 = vsel %vm162, 16843009, 0
    %v165 = vunpack.c.0.s8 %v163
    %v166 = vunpack.c.0.s8 %v164
    %vm167 = vcmp.ne.s32.totalorder %v165, 0
    %vm168 = vcmp.ne.s32.totalorder %v166, 0
    %v169 = vsel %vm167, -1e+09, %v108
    %v170 = vsel %vm168, -1e+09, %v154
    %vm171 = vcmask 64512
    %v172 = vsel %vm171, %v169, -inf
    %173 = vmax.xlane.f32.xlu0 %v172
    %v174 = vpop.xlane.xlu0 %173
    %v175 = vsel %vm171, %v170, -inf
    %176 = vmax.xlane.f32.xlu0 %v175
    %v177 = vpop.xlane.xlu0 %176
    %v178 = vsub.f32 %v169, %v174
    %v179 = vsub.f32 %v170, %v177
    %v180 = vmul.f32 %v178, 1.442695
    %v181 = vpow.pop %v180
    %v182 = vmul.f32 %v179, 1.442695
    %v183 = vpow.pop %v182
    %v184 = vsel %vm171, %v181, 0.0
    %185 = vadd.xlane.f32.xlu0 %v184
    %v186 = vpop.xlane.xlu0 %185
    %v187 = vsel %vm171, %v183, 0.0
    %188 = vadd.xlane.f32.xlu0 %v187
    %v189 = vpop.xlane.xlu0 %188
    %v190 = vrcp.pop %v186
    %v191 = vrcp.pop %v189
    %v192 = vmul.f32 %v181, %v190
    %v193 = vmul.f32 %v183, %v191
    %v194 = vpack.c.bf16 %v192, %v192
    %v195 = vpack.c.bf16 %v193, %v193
    %v196 = vld [vmem:[#allocation7] sm:$0xf]
    %v197 = vld [vmem:[#allocation7 + $0x4] sm:$0xf]
    %v199 = vsel %vm171, %v194, 0
    %vm201 = vcmask 1043456
    %v203 = vsel %vm201, %v196, 0
    %205 = vmatprep.subr.bf16.mxu0 0
    %206 = vmatpush1.bf16.msra.mxu0 0
    %207 = vmatprep.subr.bf16.mxu0 0
    %208 = vmatpush1.bf16.msra.mxu0 0
    %209 = vmatprep.subr.bf16.mxu0 0
    %210 = vmatpush1.bf16.msra.mxu0 0
    %211 = vmatprep.subr.bf16.mxu0 0
    %212 = vmatpush1.bf16.msra.mxu0 0
    %213 = vmatprep.subr.bf16.mxu0 0
    %214 = vmatpush1.bf16.msra.mxu0 0
    %215 = vmatprep.subr.bf16.mxu0 0
    %216 = vmatpush1.bf16.msra.mxu0 0
    %217 = vmatprep.subr.bf16.mxu0 0
    %218 = vmatpush1.bf16.msra.mxu0 0
    %219 = vmatprep.subr.bf16.mxu0 0
    %220 = vmatpush1.bf16.msra.mxu0 %v203
    %221 = vmatprep.subr.bf16.mxu0 0
    %222 = vmatpush2.bf16.msra.mxu0 0
    %223 = vmatprep.subr.bf16.mxu0 0
    %224 = vmatpush2.bf16.msra.mxu0 0
    %225 = vmatprep.subr.bf16.mxu0 0
    %226 = vmatpush2.bf16.msra.mxu0 0
    %227 = vmatprep.subr.bf16.mxu0 0
    %228 = vmatpush2.bf16.msra.mxu0 0
    %229 = vmatprep.subr.bf16.mxu0 0
    %230 = vmatpush2.bf16.msra.mxu0 0
    %231 = vmatprep.subr.bf16.mxu0 0
    %232 = vmatpush2.bf16.msra.mxu0 0
    %233 = vmatprep.subr.bf16.mxu0 0
    %234 = vmatpush2.bf16.msra.mxu0 0
    %235 = vmatprep.subr.bf16.mxu0 0
    %236 = vmatpush2.bf16.msra.mxu0 0
    %237 = vmatprep.mubr.bf16.mxu0 0
    %238 = vmatmul.mubr.bf16.gmra.mxu0 %v199
    %v239 = vpop.f32.mrf.mxu0
    %v240 = vadd.f32 0.0, %v239
    %v241 = vpop.f32.mrf.mxu0
    %v242 = vpop.f32.mrf.mxu0
    %v243 = vpop.f32.mrf.mxu0
    %244 = vdwg.mxu0
    %v246 = vsel %vm171, %v195, 0
    %v249 = vsel %vm201, %v197, 0
    %251 = vmatprep.subr.bf16.mxu0 0
    %252 = vmatpush1.bf16.msra.mxu0 0
    %253 = vmatprep.subr.bf16.mxu0 0
    %254 = vmatpush1.bf16.msra.mxu0 0
    %255 = vmatprep.subr.bf16.mxu0 0
    %256 = vmatpush1.bf16.msra.mxu0 0
    %257 = vmatprep.subr.bf16.mxu0 0
    %258 = vmatpush1.bf16.msra.mxu0 0
    %259 = vmatprep.subr.bf16.mxu0 0
    %260 = vmatpush1.bf16.msra.mxu0 0
    %261 = vmatprep.subr.bf16.mxu0 0
    %262 = vmatpush1.bf16.msra.mxu0 0
    %263 = vmatprep.subr.bf16.mxu0 0
    %264 = vmatpush1.bf16.msra.mxu0 0
    %265 = vmatprep.subr.bf16.mxu0 0
    %266 = vmatpush1.bf16.msra.mxu0 %v249
    %267 = vmatprep.subr.bf16.mxu0 0
    %268 = vmatpush2.bf16.msra.mxu0 0
    %269 = vmatprep.subr.bf16.mxu0 0
    %270 = vmatpush2.bf16.msra.mxu0 0
    %271 = vmatprep.subr.bf16.mxu0 0
    %272 = vmatpush2.bf16.msra.mxu0 0
    %273 = vmatprep.subr.bf16.mxu0 0
    %274 = vmatpush2.bf16.msra.mxu0 0
    %275 = vmatprep.subr.bf16.mxu0 0
    %276 = vmatpush2.bf16.msra.mxu0 0
    %277 = vmatprep.subr.bf16.mxu0 0
    %278 = vmatpush2.bf16.msra.mxu0 0
    %279 = vmatprep.subr.bf16.mxu0 0
    %280 = vmatpush2.bf16.msra.mxu0 0
    %281 = vmatprep.subr.bf16.mxu0 0
    %282 = vmatpush2.bf16.msra.mxu0 0
    %283 = vmatprep.mubr.bf16.mxu0 0
    %284 = vmatmul.mubr.bf16.gmra.mxu0 %v246
    %v285 = vpop.f32.mrf.mxu0
    %v286 = vadd.f32 0.0, %v285
    %v287 = vpop.f32.mrf.mxu0
    %v288 = vpop.f32.mrf.mxu0
    %v289 = vpop.f32.mrf.mxu0
    %290 = vdwg.mxu0
    %291 = vst.msk [vmem:[#allocation8] sm:$0xff] %vm66, %v240
    %292 = vst.msk [vmem:[#allocation8 + $0x8] sm:$0xff] %vm66, %v286
    // Predicated region
    $region30: #{tpu_custom_call.1} parent=1 // pred_check
      _
    $region31: #{tpu_custom_call.1} parent=1 // pred_check_branch
      %294 = sbr.rel (0) target = $region33
    $region32: #{tpu_custom_call.1} parent=1 // pred_region
      %s296 = ssub.s32 256, 256
      %297 = vsyncadd [#allocation4], %s296
      %s298 = sshll.u32 [#allocation8], 4
      %s299 = int_to_ptr.vmem [resolvable:$true] %s298
      %304 = dma.vmem_to_hbm [thread:$0]  %s299, 256, %s4, [#allocation4], 128, 128, 8
    $region33: #{tpu_custom_call.1} parent=1 // pred_fallthru
      _
    // Predicated region
    $region34: #{tpu_custom_call.1} parent=1 // pred_check
      _
    $region35: #{tpu_custom_call.1} parent=1 // pred_check_branch
      %306 = sbr.rel (0) target = $region37
    $region36: #{tpu_custom_call.1} parent=1 // pred_region
      %307 = dma.done [#allocation4], 256
    $region37: #{tpu_custom_call.1} parent=1 // pred_fallthru
      _
    %308 = vsyncpa [#allocation3], 1
    %309 = vsyncpa [#allocation6], 1
    %310 = vsyncpa [#allocation4], 1

</llo_original>
